<compile_context>
chip_gen: v6e
topology: v6e:2x2x1
jax: 0.10.0
libtpu: 0.0.40
codegen_flags: <defaults>
</compile_context>

<pallas_src>
import jax
import jax.numpy as jnp
from jax.experimental import pallas as pl
from jax.experimental.pallas import tpu as pltpu

KSIZE = 7            # SpatialAttention kernel_size
PAD = KSIZE // 2     # 'same' padding


def _cbam_kernel(x_ref, w1t_ref, w2t_ref, cmat_ref, cb_ref, o_ref):
    f32 = jnp.float32
    nb, C, HW = x_ref.shape

    # Load the whole batch block once; everything below reuses this value.
    x_all = x_ref[...].astype(f32)                              # (nb, C, HW)

    # ---------------- Channel attention (batched) ----------------
    p_avg = jnp.sum(x_all, axis=2) * (1.0 / float(HW))          # (nb, C)
    p_max = jnp.max(x_all, axis=2)                              # (nb, C)
    pooled = jnp.concatenate([p_avg, p_max], axis=0)            # (2*nb, C)

    w1t = w1t_ref[...].astype(f32)                              # (C, hidden) == W1.T
    w2t = w2t_ref[...].astype(f32)                              # (hidden, C) == W2.T
    h = jnp.maximum(
        jnp.dot(pooled, w1t, preferred_element_type=f32), 0.0)  # (2*nb, hidden)
    s = jax.nn.sigmoid(
        jnp.dot(h, w2t, preferred_element_type=f32))            # (2*nb, C)
    # Module spec: sigmoid(fc(avg)) + sigmoid(fc(max))
    scales = s[:nb] + s[nb:]                                    # (nb, C)

    x_ca = x_all * scales[:, :, None]                           # (nb, C, HW)

    # ---------------- Spatial attention: 7x7 conv as one band-matrix matmul ----------------
    avg_map = jnp.sum(x_ca, axis=1) * (1.0 / float(C))          # (nb, HW)
    max_map = jnp.max(x_ca, axis=1)                             # (nb, HW)
    feat = jnp.concatenate([avg_map, max_map], axis=1)          # (nb, 2*HW)

    logits = jnp.dot(feat, cmat_ref[...],
                     preferred_element_type=f32) + cb_ref[0]    # (nb, HW)
    attn = jax.nn.sigmoid(logits)                               # (nb, HW)

    # ---------------- Apply attention & lane-dense store ----------------
    o_ref[...] = (x_ca * attn[:, None, :]).astype(o_ref.dtype)


def _build_conv_band_matrix(conv_w, H, W):
    """(2*HW, HW) matrix M with logits = concat([avg, max], -1) @ M  ==  7x7 'same' conv."""
    HW = H * W
    idx = jnp.arange(HW, dtype=jnp.int32)
    y = idx // W
    x = idx % W
    dy = y[:, None] - y[None, :] + PAD                          # (in, out): ky index
    dx = x[:, None] - x[None, :] + PAD                          # (in, out): kx index
    valid = (dy >= 0) & (dy < KSIZE) & (dx >= 0) & (dx < KSIZE)
    dyc = jnp.clip(dy, 0, KSIZE - 1)
    dxc = jnp.clip(dx, 0, KSIZE - 1)
    w = conv_w.astype(jnp.float32)
    m_avg = jnp.where(valid, w[0, 0][dyc, dxc], 0.0)            # (HW, HW)
    m_max = jnp.where(valid, w[0, 1][dyc, dxc], 0.0)            # (HW, HW)
    return jnp.concatenate([m_avg, m_max], axis=0)              # (2*HW, HW)


def _vmem_capacity_bytes():
    try:
        cap = getattr(pltpu.get_tpu_info(), "vmem_capacity_bytes", None)
        if cap:
            return int(cap)
    except Exception:
        pass
    return 64 * 1024 * 1024                                     # conservative (v7x per-TC)


def _pick_block_b(B, C, HW, conv_mat_bytes, itemsize):
    budget = int(_vmem_capacity_bytes() * 0.4)                  # headroom for temps/scratch
    fixed = 2 * conv_mat_bytes                                  # band matrix (double-buffered)
    # double-buffered in + out tiles in x dtype, plus ~3 live f32 temps per element
    per_sample = (4 * itemsize + 12) * C * HW
    max_bb = max(1, (budget - fixed) // per_sample)
    divisors = [bb for bb in range(B, 0, -1) if B % bb == 0 and bb <= max_bb]
    if not divisors:
        return 1
    # Prefer >= 2 grid steps so the "parallel" axis can shard across TCs (v7x megacore).
    for bb in divisors:
        if B // bb >= 2:
            return bb
    return divisors[0]


def cbam_pallas(x, w1, w2, conv_w, conv_b, *, block_b=None):
    """x: (B,C,H,W); w1: (C//r, C); w2: (C, C//r); conv_w: (1,2,7,7); conv_b: (1,)."""
    B, C, H, W = x.shape
    hidden = w1.shape[0]
    HW = H * W

    x_flat = x.reshape(B, C, HW)                                # lane-dense (free reshape)
    conv_mat = _build_conv_band_matrix(conv_w, H, W)            # (2*HW, HW) f32
    w1t = w1.T.astype(jnp.float32)                              # (C, hidden)
    w2t = w2.T.astype(jnp.float32)                              # (hidden, C)
    cb = conv_b.astype(jnp.float32).reshape(1)

    itemsize = jnp.dtype(x.dtype).itemsize
    conv_mat_bytes = 2 * HW * HW * 4
    if block_b is None:
        block_b = _pick_block_b(B, C, HW, conv_mat_bytes, itemsize)

    # Raise the scoped VMEM limit only if this placement actually needs it.
    est_bytes = (4 * itemsize + 12) * block_b * C * HW + 2 * conv_mat_bytes
    cparams = {"dimension_semantics": ("parallel",)}
    if est_bytes > (28 << 20):
        cparams["vmem_limit_bytes"] = min(2 * est_bytes,
                                          int(_vmem_capacity_bytes() * 0.85))

    out = pl.pallas_call(
        _cbam_kernel,
        out_shape=jax.ShapeDtypeStruct((B, C, HW), x.dtype),
        grid=(B // block_b,),
        in_specs=[
            pl.BlockSpec((block_b, C, HW), lambda g: (g, 0, 0)),     # x (flattened)
            pl.BlockSpec((C, hidden), lambda g: (0, 0)),             # W1.T
            pl.BlockSpec((hidden, C), lambda g: (0, 0)),             # W2.T
            pl.BlockSpec((2 * HW, HW), lambda g: (0, 0)),            # conv band matrix
            pl.BlockSpec(memory_space=pltpu.MemorySpace.SMEM),       # conv bias (scalar)
        ],
        out_specs=pl.BlockSpec((block_b, C, HW), lambda g: (g, 0, 0)),
        compiler_params=pltpu.CompilerParams(**cparams),
    )(x_flat, w1t, w2t, conv_mat, cb)
    return out.reshape(B, C, H, W)


def cbam_ref(x, w1, w2, conv_w, conv_b):
    """Pure-JAX reference mirroring the PyTorch forward."""
    avg = jnp.mean(x, axis=(2, 3))
    mx = jnp.max(x, axis=(2, 3))

    def fc(v):
        h = jnp.maximum(v @ w1.T, 0.0)
        return jax.nn.sigmoid(h @ w2.T)

    scale = fc(avg) + fc(mx)
    x = x * scale[:, :, None, None]
    am = jnp.mean(x, axis=1, keepdims=True)
    mm = jnp.max(x, axis=1, keepdims=True)
    cc = jnp.concatenate([am, mm], axis=1)
    sp = jax.lax.conv_general_dilated(
        cc, conv_w, window_strides=(1, 1), padding=[(PAD, PAD), (PAD, PAD)],
        dimension_numbers=("NCHW", "OIHW", "NCHW")) + conv_b.reshape(1, 1, 1, 1)
    return x * jax.nn.sigmoid(sp)


if __name__ == "__main__":
    B, C, H, W = 2, 32, 16, 16     # channels must be divisible by reduction_ratio=16
    hidden = C // 16

    key = jax.random.PRNGKey(0)
    kx, k1, k2, k3, k4 = jax.random.split(key, 5)
    x = jax.random.normal(kx, (B, C, H, W), dtype=jnp.float32)
    w1 = jax.random.normal(k1, (hidden, C), dtype=jnp.float32) * 0.1   # Linear(C -> C//16), no bias
    w2 = jax.random.normal(k2, (C, hidden), dtype=jnp.float32) * 0.1   # Linear(C//16 -> C), no bias
    conv_w = jax.random.normal(k3, (1, 2, KSIZE, KSIZE), dtype=jnp.float32) * 0.1
    conv_b = jax.random.normal(k4, (1,), dtype=jnp.float32) * 0.1

    out = jax.block_until_ready(cbam_pallas(x, w1, w2, conv_w, conv_b))

    ref = cbam_ref(x, w1, w2, conv_w, conv_b)
    err = float(jnp.max(jnp.abs(out - ref)))
    assert jnp.allclose(out, ref, rtol=1e-4, atol=1e-4), f"max abs err = {err}"
    print("KERNEL_OK")
</pallas_src>

<mosaic_0001>
module attributes {stable_mosaic.version = 11 : i64} {
  func.func @_cbam_kernel(%arg0: i32, %arg1: memref<1x32x256xf32, #tpu.memory_space<vmem>>, %arg2: memref<32x2xf32, #tpu.memory_space<vmem>>, %arg3: memref<2x32xf32, #tpu.memory_space<vmem>>, %arg4: memref<512x256xf32, #tpu.memory_space<vmem>>, %arg5: memref<1xf32, #tpu.memory_space<smem>>, %arg6: memref<1x32x256xf32, #tpu.memory_space<vmem>>) attributes {dimension_semantics = [#tpu.dimension_semantics<parallel>], iteration_bounds = array<i64: 2>, scalar_prefetch = 0 : i64, scratch_operands = 0 : i64, tpu.core_type = #tpu.core_type<tc>, window_params = [{transform_indices = @transform_0, window_bounds = array<i64: 1, 32, 256>}, {pipeline_mode = #tpu.pipeline_mode<synchronous>, transform_indices = @transform_1, window_bounds = array<i64: 32, 2>}, {pipeline_mode = #tpu.pipeline_mode<synchronous>, transform_indices = @transform_2, window_bounds = array<i64: 2, 32>}, {pipeline_mode = #tpu.pipeline_mode<synchronous>, transform_indices = @transform_3, window_bounds = array<i64: 512, 256>}, {transform_indices = @transform_4, window_bounds = array<i64: 1>}, {transform_indices = @transform_5, window_bounds = array<i64: 1, 32, 256>}]} {
    %c0 = arith.constant 0 : index
    %c0_0 = arith.constant 0 : index
    %c0_1 = arith.constant 0 : index
    %0 = vector.load %arg1[%c0, %c0_0, %c0_1] : memref<1x32x256xf32, #tpu.memory_space<vmem>>, vector<1x32x256xf32>
    %cst = arith.constant dense<0.000000e+00> : vector<1x32xf32>
    %1 = vector.multi_reduction <add>, %0, %cst [2] : vector<1x32x256xf32> to vector<1x32xf32>
    %cst_2 = arith.constant 3.906250e-03 : f32
    %2 = vector.broadcast %cst_2 : f32 to vector<1x32xf32>
    %3 = arith.mulf %1, %2 : vector<1x32xf32>
    %cst_3 = arith.constant dense<0xFF800000> : vector<1x32xf32>
    %4 = vector.multi_reduction <maximumf>, %0, %cst_3 [2] : vector<1x32x256xf32> to vector<1x32xf32>
    %5 = tpu.concatenate %3, %4 in 0 : vector<1x32xf32>, vector<1x32xf32> -> vector<2x32xf32>
    %c0_4 = arith.constant 0 : index
    %c0_5 = arith.constant 0 : index
    %6 = vector.load %arg2[%c0_4, %c0_5] : memref<32x2xf32, #tpu.memory_space<vmem>>, vector<32x2xf32>
    %c0_6 = arith.constant 0 : index
    %c0_7 = arith.constant 0 : index
    %7 = vector.load %arg3[%c0_6, %c0_7] : memref<2x32xf32, #tpu.memory_space<vmem>>, vector<2x32xf32>
    %cst_8 = arith.constant dense<0.000000e+00> : vector<2x2xf32>
    %8 = tpu.matmul %5, %6, %cst_8 {dimension_numbers = #tpu.dot_dimension_numbers<[1], [0], [0], [1], [0, 0, 1, 1], [], []>} : vector<2x32xf32>, vector<32x2xf32>, vector<2x2xf32> -> vector<2x2xf32>
    %cst_9 = arith.constant 0.000000e+00 : f32
    %9 = vector.broadcast %cst_9 : f32 to vector<2x2xf32>
    %10 = arith.maximumf %8, %9 : vector<2x2xf32>
    %cst_10 = arith.constant dense<0.000000e+00> : vector<2x32xf32>
    %11 = tpu.matmul %10, %7, %cst_10 {dimension_numbers = #tpu.dot_dimension_numbers<[1], [0], [0], [1], [0, 0, 1, 1], [], []>} : vector<2x2xf32>, vector<2x32xf32>, vector<2x32xf32> -> vector<2x32xf32>
    %12 = arith.negf %11 : vector<2x32xf32>
    %13 = math.exp %12 : vector<2x32xf32>
    %cst_11 = arith.constant 1.000000e+00 : f32
    %14 = vector.broadcast %cst_11 : f32 to vector<2x32xf32>
    %15 = arith.addf %14, %13 : vector<2x32xf32>
    %16 = arith.divf %14, %15 : vector<2x32xf32>
    %17 = vector.extract_strided_slice %16 {offsets = [0, 0], sizes = [1, 32], strides = [1, 1]} : vector<2x32xf32> to vector<1x32xf32>
    %18 = vector.extract_strided_slice %16 {offsets = [1, 0], sizes = [1, 32], strides = [1, 1]} : vector<2x32xf32> to vector<1x32xf32>
    %19 = arith.addf %17, %18 : vector<1x32xf32>
    %20 = vector.shape_cast %19 : vector<1x32xf32> to vector<1x32x1xf32>
    %21 = vector.broadcast %20 : vector<1x32x1xf32> to vector<1x32x256xf32>
    %22 = arith.mulf %0, %21 : vector<1x32x256xf32>
    %cst_12 = arith.constant dense<0.000000e+00> : vector<1x256xf32>
    %23 = vector.multi_reduction <add>, %22, %cst_12 [1] : vector<1x32x256xf32> to vector<1x256xf32>
    %cst_13 = arith.constant 3.125000e-02 : f32
    %24 = vector.broadcast %cst_13 : f32 to vector<1x256xf32>
    %25 = arith.mulf %23, %24 : vector<1x256xf32>
    %cst_14 = arith.constant dense<0xFF800000> : vector<1x256xf32>
    %26 = vector.multi_reduction <maximumf>, %22, %cst_14 [1] : vector<1x32x256xf32> to vector<1x256xf32>
    %27 = tpu.concatenate %25, %26 in 1 : vector<1x256xf32>, vector<1x256xf32> -> vector<1x512xf32>
    %c0_15 = arith.constant 0 : index
    %c0_16 = arith.constant 0 : index
    %28 = vector.load %arg4[%c0_15, %c0_16] : memref<512x256xf32, #tpu.memory_space<vmem>>, vector<512x256xf32>
    %cst_17 = arith.constant dense<0.000000e+00> : vector<1x256xf32>
    %29 = tpu.matmul %27, %28, %cst_17 {dimension_numbers = #tpu.dot_dimension_numbers<[1], [0], [0], [1], [0, 0, 1, 1], [], []>} : vector<1x512xf32>, vector<512x256xf32>, vector<1x256xf32> -> vector<1x256xf32>
    %c0_18 = arith.constant 0 : index
    %30 = memref.load %arg5[%c0_18] : memref<1xf32, #tpu.memory_space<smem>>
    %31 = vector.broadcast %30 : f32 to vector<1x256xf32>
    %32 = arith.addf %29, %31 : vector<1x256xf32>
    %33 = arith.negf %32 : vector<1x256xf32>
    %34 = math.exp %33 : vector<1x256xf32>
    %cst_19 = arith.constant 1.000000e+00 : f32
    %35 = vector.broadcast %cst_19 : f32 to vector<1x256xf32>
    %36 = arith.addf %35, %34 : vector<1x256xf32>
    %37 = arith.divf %35, %36 : vector<1x256xf32>
    %38 = vector.shape_cast %37 : vector<1x256xf32> to vector<1x1x256xf32>
    %39 = vector.broadcast %38 : vector<1x1x256xf32> to vector<1x32x256xf32>
    %40 = arith.mulf %22, %39 : vector<1x32x256xf32>
    %c0_20 = arith.constant 0 : index
    %c0_21 = arith.constant 0 : index
    %c0_22 = arith.constant 0 : index
    %41 = vector.load %arg6[%c0_20, %c0_21, %c0_22] : memref<1x32x256xf32, #tpu.memory_space<vmem>>, vector<1x32x256xf32>
    tpu.vector_store %arg6[%c0_20, %c0_21, %c0_22], %40 {strides = array<i32>} : memref<1x32x256xf32, #tpu.memory_space<vmem>>, vector<1x32x256xf32>,
    return
  }
  func.func @transform_0(%arg0: i32) -> (i32, i32, i32) {
    %c0_i32 = arith.constant 0 : i32
    %c0_i32_0 = arith.constant 0 : i32
    %c0_i32_1 = arith.constant 0 : i32
    return %arg0, %c0_i32, %c0_i32_0 : i32, i32, i32
  }
  func.func @transform_1(%arg0: i32) -> (i32, i32) {
    %c0_i32 = arith.constant 0 : i32
    %c0_i32_0 = arith.constant 0 : i32
    %c0_i32_1 = arith.constant 0 : i32
    return %c0_i32, %c0_i32_0 : i32, i32
  }
  func.func @transform_2(%arg0: i32) -> (i32, i32) {
    %c0_i32 = arith.constant 0 : i32
    %c0_i32_0 = arith.constant 0 : i32
    %c0_i32_1 = arith.constant 0 : i32
    return %c0_i32, %c0_i32_0 : i32, i32
  }
  func.func @transform_3(%arg0: i32) -> (i32, i32) {
    %c0_i32 = arith.constant 0 : i32
    %c0_i32_0 = arith.constant 0 : i32
    %c0_i32_1 = arith.constant 0 : i32
    return %c0_i32, %c0_i32_0 : i32, i32
  }
  func.func @transform_4(%arg0: i32) -> i32 {
    %c0_i32 = arith.constant 0 : i32
    %c0_i32_0 = arith.constant 0 : i32
    return %c0_i32 : i32
  }
  func.func @transform_5(%arg0: i32) -> (i32, i32, i32) {
    %c0_i32 = arith.constant 0 : i32
    %c0_i32_0 = arith.constant 0 : i32
    %c0_i32_1 = arith.constant 0 : i32
    return %arg0, %c0_i32, %c0_i32_0 : i32, i32, i32
  }
}

</mosaic_0001>

<llo_original>
// kernel: tpu_custom_call.1
$region0: #{tpu_custom_call.1}
  #allocation0 [shape = 'u32[]', space=smem, size = 0x4, offset = 0x4, fixed_abs, tag = 'smem constant byte address 0x4 - core index']
  #allocation1 [shape = 'u32[144,128]{1,0:T(1,128)}', space=vmem, size = 0x12000, scoped, tag = 'internal scratch']
  #allocation2 [shape = 'f32[1]{0:T(128)S(6)}', space=smem, size = 0x200, scoped, tag = 'scoped memory for tpu_custom_call.1']
  %s0 = inlined_call_operand.hbm [shape: f32[2,32,256], index: 0, kind: input, shape index: {}]
  %s1 = inlined_call_operand.vmem [shape: f32[32,2], index: 1, kind: input, shape index: {}]
  %s2 = inlined_call_operand.vmem [shape: f32[2,32], index: 2, kind: input, shape index: {}]
  %s3 = inlined_call_operand.hbm [shape: f32[512,256], index: 3, kind: input, shape index: {}]
  %s4 = inlined_call_operand.<no memory space> [shape: f32[1], index: 4, kind: input, shape index: {}]
  %s5 = inlined_call_operand.hbm [shape: f32[2,32,256], index: 5, kind: output, shape index: {}]
  %s6 = sld [smem:[#allocation0]]
  $region61: #{tpu_custom_call.1} parent=0
    _
  %s8 = ssub.s32 1, %s6
  %s9 = scalar_select 0, %s8, %s6
  %10 = sst [smem:[#allocation2]] %s4
  $region1: #{tpu_custom_call.1} parent=0
    #allocation3 [shape = 'u8[65536]{0}', space=vmem, size = 0x10000, scoped, tag = 'input window, operand 0']
    #allocation4 [shape = 's32[2]{0}', space=sflag, size = 0x8, scoped, tag = 'scoped memory for tpu_custom_call.1']
    #allocation5 [shape = 's32[2]{0}', space=sflag, size = 0x8, scoped, tag = 'scoped memory for tpu_custom_call.1']
    #allocation6 [shape = 'u8[524288]{0}', space=vmem, size = 0x80000, scoped, tag = 'input window, operand 3, single buffered']
    #allocation7 [shape = 's32[1]{0}', space=sflag, size = 0x4, scoped, tag = 'scoped memory for tpu_custom_call.1']
    #allocation8 [shape = 'u8[65536]{0}', space=vmem, size = 0x10000, scoped, tag = 'output window, operand 0']
    %11 = vsyncpa [#allocation4], 0
    %s12 = scalar_lea.sflag [#allocation4], 1
    %13 = vsyncpa %s12, 0
    %14 = vsyncpa [#allocation7], 0
    %15 = vsyncpa [#allocation5], 0
    %s16 = scalar_lea.sflag [#allocation5], 1
    %17 = vsyncpa %s16, 0
    loop: start=0, step=1, limit=4
    $region2: #{tpu_custom_call.1} parent=1 // loop_pre_header
      _
    $region3: #{tpu_custom_call.1} parent=1 // loop_header
      %s19 = sphi 0, %s23
      %p20 = scmp.ge.s32.totalorder %s19, 4
      %s29 = sphi 0, %s31
      %s32 = sphi 0, %s29
      %s33 = sphi 0, %s32
      %s49 = sphi 0, %s33
      %s53 = sphi 0, %s53
      %s55 = sphi 0, %s53
      %s56 = sphi 0, %s55
      %s70 = sphi 0, %s56
      %s74 = sphi 0, %s74
      %s76 = sphi 0, %s74
      %s77 = sphi 0, %s76
      %s91 = sphi 0, %s77
      %s95 = sphi 0, %s95
      %s97 = sphi 0, %s95
      %s98 = sphi 0, %s97
      %s112 = sphi 0, %s98
      %s116 = sphi 0, %s116
      %s118 = sphi 0, %s116
      %s119 = sphi 0, %s118
      %s133 = sphi 0, %s119
      %s139 = sphi 0, %s141
      %s142 = sphi 0, %s139
      %s143 = sphi 0, %s142
      %s159 = sphi 0, %s143
    $region4: #{tpu_custom_call.1} parent=1 // loop_header_branch
      %22 = sbr.rel (%p20) target = $region8
    $region5: #{tpu_custom_call.1} parent=1 // loop_body
      %s24 = ssub.s32 %s19, 1
      %s25 = ssub.s32 %s19, 2
      %s26 = sadd.s32 %s19, 1
      %s27 = ssub.s32 %s19, %s26
      %p28 = scmp.eq.s32.totalorder %s27, 0
      %s30 = sadd.s32 %s29, 1
      %s31 = scalar_select %p28, %s29, %s30
      %p34 = pneg %p28
      %p35 = scmp.eq.s32.totalorder %s19, 1
      %p36 = por %p34, %p35
      %p37 = scmp.ne.s32.totalorder %s29, %s32
      %p38 = scmp.eq.s32.totalorder %s19, 0
      %p39 = por %p37, %p38
      %p40 = scmp.ne.s32.totalorder %s29, %s32
      %p41 = scmp.eq.s32.totalorder %s24, 1
      %p42 = por %p40, %p41
      %p43 = scmp.ne.s32.totalorder %s32, %s33
      %p44 = scmp.eq.s32.totalorder %s24, 0
      %p45 = por %p43, %p44
      %p46 = scmp.ne.s32.totalorder %s32, %s33
      %p47 = scmp.eq.s32.totalorder %s25, 1
      %p48 = por %p46, %p47
      %p50 = scmp.ne.s32.totalorder %s33, %s49
      %p51 = scmp.eq.s32.totalorder %s25, 0
      %p52 = por %p50, %p51
      %s54 = sadd.s32 %s53, 1
      %p57 = scmp.eq.s32.totalorder %s19, 1
      %p58 = scmp.ne.s32.totalorder %s53, %s55
      %p59 = scmp.eq.s32.totalorder %s19, 0
      %p60 = por %p58, %p59
      %p61 = scmp.ne.s32.totalorder %s53, %s55
      %p62 = scmp.eq.s32.totalorder %s24, 1
      %p63 = por %p61, %p62
      %p64 = scmp.ne.s32.totalorder %s55, %s56
      %p65 = scmp.eq.s32.totalorder %s24, 0
      %p66 = por %p64, %p65
      %p67 = scmp.ne.s32.totalorder %s55, %s56
      %p68 = scmp.eq.s32.totalorder %s25, 1
      %p69 = por %p67, %p68
      %p71 = scmp.ne.s32.totalorder %s56, %s70
      %p72 = scmp.eq.s32.totalorder %s25, 0
      %p73 = por %p71, %p72
      %s75 = sadd.s32 %s74, 1
      %p78 = scmp.eq.s32.totalorder %s19, 1
      %p79 = scmp.ne.s32.totalorder %s74, %s76
      %p80 = scmp.eq.s32.totalorder %s19, 0
      %p81 = por %p79, %p80
      %p82 = scmp.ne.s32.totalorder %s74, %s76
      %p83 = scmp.eq.s32.totalorder %s24, 1
      %p84 = por %p82, %p83
      %p85 = scmp.ne.s32.totalorder %s76, %s77
      %p86 = scmp.eq.s32.totalorder %s24, 0
      %p87 = por %p85, %p86
      %p88 = scmp.ne.s32.totalorder %s76, %s77
      %p89 = scmp.eq.s32.totalorder %s25, 1
      %p90 = por %p88, %p89
      %p92 = scmp.ne.s32.totalorder %s77, %s91
      %p93 = scmp.eq.s32.totalorder %s25, 0
      %p94 = por %p92, %p93
      %s96 = sadd.s32 %s95, 1
      %p99 = scmp.eq.s32.totalorder %s19, 1
      %p100 = scmp.ne.s32.totalorder %s95, %s97
      %p101 = scmp.eq.s32.totalorder %s19, 0
      %p102 = por %p100, %p101
      %p103 = scmp.ne.s32.totalorder %s95, %s97
      %p104 = scmp.eq.s32.totalorder %s24, 1
      %p105 = por %p103, %p104
      %p106 = scmp.ne.s32.totalorder %s97, %s98
      %p107 = scmp.eq.s32.totalorder %s24, 0
      %p108 = por %p106, %p107
      %p109 = scmp.ne.s32.totalorder %s97, %s98
      %p110 = scmp.eq.s32.totalorder %s25, 1
      %p111 = por %p109, %p110
      %p113 = scmp.ne.s32.totalorder %s98, %s112
      %p114 = scmp.eq.s32.totalorder %s25, 0
      %p115 = por %p113, %p114
      %s117 = sadd.s32 %s116, 1
      %p120 = scmp.eq.s32.totalorder %s19, 1
      %p121 = scmp.ne.s32.totalorder %s116, %s118
      %p122 = scmp.eq.s32.totalorder %s19, 0
      %p123 = por %p121, %p122
      %p124 = scmp.ne.s32.totalorder %s116, %s118
      %p125 = scmp.eq.s32.totalorder %s24, 1
      %p126 = por %p124, %p125
      %p127 = scmp.ne.s32.totalorder %s118, %s119
      %p128 = scmp.eq.s32.totalorder %s24, 0
      %p129 = por %p127, %p128
      %p130 = scmp.ne.s32.totalorder %s118, %s119
      %p131 = scmp.eq.s32.totalorder %s25, 1
      %p132 = por %p130, %p131
      %p134 = scmp.ne.s32.totalorder %s119, %s133
      %p135 = scmp.eq.s32.totalorder %s25, 0
      %p136 = por %p134, %p135
      %s137 = ssub.s32 %s19, %s26
      %p138 = scmp.eq.s32.totalorder %s137, 0
      %s140 = sadd.s32 %s139, 1
      %s141 = scalar_select %p138, %s139, %s140
      %p144 = pneg %p138
      %p145 = scmp.eq.s32.totalorder %s19, 1
      %p146 = por %p144, %p145
      %p147 = scmp.ne.s32.totalorder %s139, %s142
      %p148 = scmp.eq.s32.totalorder %s19, 0
      %p149 = por %p147, %p148
      %p150 = scmp.ne.s32.totalorder %s139, %s142
      %p151 = scmp.eq.s32.totalorder %s24, 1
      %p152 = por %p150, %p151
      %p153 = scmp.ne.s32.totalorder %s142, %s143
      %p154 = scmp.eq.s32.totalorder %s24, 0
      %p155 = por %p153, %p154
      %p156 = scmp.ne.s32.totalorder %s142, %s143
      %p157 = scmp.eq.s32.totalorder %s25, 1
      %p158 = por %p156, %p157
      %p160 = scmp.ne.s32.totalorder %s143, %s159
      %p161 = scmp.eq.s32.totalorder %s25, 0
      %p162 = por %p160, %p161
      %p163 = scmp.le.s32.totalorder 1, %s19
      %p164 = scmp.lt.s32.totalorder %s19, 3
      %p165 = pnand %p163, %p164
      %p166 = pneg %p165
      // Predicated region
      $region9: #{tpu_custom_call.1} parent=5 // pred_check
        _
      $region10: #{tpu_custom_call.1} parent=5 // pred_check_branch
        %168 = sbr.rel (%p165) target = $region12
      $region11: #{tpu_custom_call.1} parent=5 // pred_region
        %s169 = ssub.s32 %s19, 1
        // Predicated region
        $region13: #{tpu_custom_call.1} parent=11 // pred_check
          %p170 = pneg %p66
        $region14: #{tpu_custom_call.1} parent=11 // pred_check_branch
          %172 = sbr.rel (%p170) target = $region16
        $region15: #{tpu_custom_call.1} parent=11 // pred_region
          _
        $region16: #{tpu_custom_call.1} parent=11 // pred_fallthru
          _
        // Predicated region
        $region17: #{tpu_custom_call.1} parent=11 // pred_check
          %p173 = pneg %p87
        $region18: #{tpu_custom_call.1} parent=11 // pred_check_branch
          %175 = sbr.rel (%p173) target = $region20
        $region19: #{tpu_custom_call.1} parent=11 // pred_region
          _
        $region20: #{tpu_custom_call.1} parent=11 // pred_fallthru
          _
        // Predicated region
        $region21: #{tpu_custom_call.1} parent=11 // pred_check
          %p176 = pneg %p108
        $region22: #{tpu_custom_call.1} parent=11 // pred_check_branch
          %178 = sbr.rel (%p176) target = $region24
        $region23: #{tpu_custom_call.1} parent=11 // pred_region
          %s180 = ssub.s32 16384, 16384
          %181 = vsyncadd [#allocation7], %s180
          %s182 = sshll.u32 [#allocation6], 4
          %s183 = int_to_ptr.vmem [resolvable:$true] %s182
          %188 = dma.hbm_to_vmem [thread:$0]  %s3, 16384, %s183, [#allocation7], 256, 256, 16
        $region24: #{tpu_custom_call.1} parent=11 // pred_fallthru
          _
        // Predicated region
        $region25: #{tpu_custom_call.1} parent=11 // pred_check
          %p189 = pneg %p129
        $region26: #{tpu_custom_call.1} parent=11 // pred_check_branch
          %191 = sbr.rel (%p189) target = $region28
        $region27: #{tpu_custom_call.1} parent=11 // pred_region
          _
        $region28: #{tpu_custom_call.1} parent=11 // pred_fallthru
          _
      $region12: #{tpu_custom_call.1} parent=5 // pred_fallthru
        _
      %p192 = scmp.lt.s32.totalorder %s19, 2
      // Predicated region
      $region29: #{tpu_custom_call.1} parent=5 // pred_check
        %p193 = pneg %p192
      $region30: #{tpu_custom_call.1} parent=5 // pred_check_branch
        %195 = sbr.rel (%p193) target = $region32
      $region31: #{tpu_custom_call.1} parent=5 // pred_region
        // Predicated region
        $region33: #{tpu_custom_call.1} parent=31 // pred_check
          %p196 = pneg %p39
        $region34: #{tpu_custom_call.1} parent=31 // pred_check_branch
          %198 = sbr.rel (%p196) target = $region36
        $region35: #{tpu_custom_call.1} parent=31 // pred_region
          %s199 = sand.u32 %s29, 1
          %s200 = scalar_lea.sflag [#allocation4], %s199
          %s201 = sand.u32 %s29, 1
          %s202 = smul.addr %s201, 64
          %s203 = scalar_lea.vmem [#allocation3], %s202
          %s205 = ssub.s32 1024, 1024
          %206 = vsyncadd %s200, %s205
          %s207 = smul.addr %s19, 8
          %s208 = smul.addr %s207, 128
          %s209 = scalar_lea.hbm %s0, %s208
          %s210 = sshll.u32 %s203, 4
          %s211 = int_to_ptr.vmem [resolvable:$true] %s210
          %216 = dma.hbm_to_vmem [thread:$0]  %s209, 1024, %s211, %s200, 256, 256, 16
        $region36: #{tpu_custom_call.1} parent=31 // pred_fallthru
          _
      $region32: #{tpu_custom_call.1} parent=5 // pred_fallthru
        _
      %p217 = scmp.le.s32.totalorder 1, %s19
      %p218 = scmp.lt.s32.totalorder %s19, 3
      %p219 = pnand %p217, %p218
      %p220 = pneg %p219
      // Predicated region
      $region37: #{tpu_custom_call.1} parent=5 // pred_check
        _
      $region38: #{tpu_custom_call.1} parent=5 // pred_check_branch
        %222 = sbr.rel (%p219) target = $region40
      $region39: #{tpu_custom_call.1} parent=5 // pred_region
        %s223 = ssub.s32 %s19, 1
        %s224 = sand.u32 %s32, 1
        %s225 = scalar_lea.sflag [#allocation4], %s224
        %s226 = sand.u32 %s32, 1
        %s227 = smul.addr %s226, 64
        %s228 = scalar_lea.vmem [#allocation3], %s227
        // Predicated region
        $region41: #{tpu_custom_call.1} parent=39 // pred_check
          %p229 = pneg %p45
        $region42: #{tpu_custom_call.1} parent=39 // pred_check_branch
          %231 = sbr.rel (%p229) target = $region44
        $region43: #{tpu_custom_call.1} parent=39 // pred_region
          %232 = dma.done %s225, 1024
        $region44: #{tpu_custom_call.1} parent=39 // pred_fallthru
          _
        // Predicated region
        $region45: #{tpu_custom_call.1} parent=39 // pred_check
          %p233 = pneg %p108
        $region46: #{tpu_custom_call.1} parent=39 // pred_check_branch
          %235 = sbr.rel (%p233) target = $region48
        $region47: #{tpu_custom_call.1} parent=39 // pred_region
          %236 = dma.done [#allocation7], 16384
        $region48: #{tpu_custom_call.1} parent=39 // pred_fallthru
          _
        %s237 = sand.u32 %s32, 1
        %s238 = scalar_lea.sflag [#allocation4], %s237
        %s239 = sand.u32 %s32, 1
        %s240 = smul.addr %s239, 64
        %s241 = scalar_lea.vmem [#allocation3], %s240
        %p242 = pneg %p45
        %p243 = pneg %p42
        %p244 = pneg %p66
        %p245 = pneg %p63
        %p246 = pneg %p87
        %p247 = pneg %p84
        %p248 = pneg %p108
        %p249 = pneg %p105
        %p250 = pneg %p129
        %p251 = pneg %p126
        %p252 = pneg %p155
        %p253 = pneg %p152
        %s254 = sand.u32 %s142, 1
        %s255 = scalar_lea.sflag [#allocation5], %s254
        %s256 = sand.u32 %s142, 1
        %s257 = smul.addr %s256, 64
        %s258 = scalar_lea.vmem [#allocation8], %s257
        %v259 = vld [vmem:[%s228] sm:$0xff]
        %v260 = vld [vmem:[%s228 + $0x8] sm:$0xff]
        %v261 = vld [vmem:[%s228 + $0x10] sm:$0xff]
        %v262 = vld [vmem:[%s228 + $0x18] sm:$0xff]
        %v263 = vld [vmem:[%s228 + $0x20] sm:$0xff]
        %v264 = vld [vmem:[%s228 + $0x28] sm:$0xff]
        %v265 = vld [vmem:[%s228 + $0x30] sm:$0xff]
        %v266 = vld [vmem:[%s228 + $0x38] sm:$0xff]
        %v267 = vadd.f32 %v259, %v260
        %268 = vadd.xlane.f32.xlu0 %v267
        %v269 = vpop.xlane.xlu0 %268
        %v270 = vadd.f32 %v261, %v262
        %271 = vadd.xlane.f32.xlu0 %v270
        %v272 = vpop.xlane.xlu0 %271
        %v273 = vadd.f32 %v263, %v264
        %274 = vadd.xlane.f32.xlu0 %v273
        %v275 = vpop.xlane.xlu0 %274
        %v276 = vadd.f32 %v265, %v266
        %277 = vadd.xlane.f32.xlu0 %v276
        %v278 = vpop.xlane.xlu0 %277
        %v279 = vmul.f32 %v269, 0.00390625
        %v280 = vmul.f32 %v272, 0.00390625
        %v281 = vmul.f32 %v275, 0.00390625
        %v282 = vmul.f32 %v278, 0.00390625
        %v283 = vmax.f32 %v259, %v260
        %284 = vmax.xlane.f32.xlu0 %v283
        %v285 = vpop.xlane.xlu0 %284
        %v286 = vmax.f32 %v261, %v262
        %287 = vmax.xlane.f32.xlu0 %v286
        %v288 = vpop.xlane.xlu0 %287
        %v289 = vmax.f32 %v263, %v264
        %290 = vmax.xlane.f32.xlu0 %v289
        %v291 = vpop.xlane.xlu0 %290
        %v292 = vmax.f32 %v265, %v266
        %293 = vmax.xlane.f32.xlu0 %v292
        %v294 = vpop.xlane.xlu0 %293
        %v299 = vlaneseq
        %v300 = vand.u32 %v299, 127
        %v301 = vlaneseq
        %v302 = vshrl.u32 %v301, 7
        %v303 = vsub.s32 %v300, %v302
        %v304 = vrot.slane %v279, %v303
        %v305 = vadd.s32 %v300, 4294967288
        %v306 = vlaneseq
        %v307 = vshrl.u32 %v306, 7
        %v308 = vsub.s32 %v305, %v307
        %v309 = vrot.slane %v280, %v308
        %vm310 = vcmask 130112
        %v311 = vsel %vm310, %v309, %v304
        %v312 = vadd.s32 %v300, 4294967280
        %v313 = vlaneseq
        %v314 = vshrl.u32 %v313, 7
        %v315 = vsub.s32 %v312, %v314
        %v316 = vrot.slane %v281, %v315
        %vm317 = vcmask 195712
        %v318 = vsel %vm317, %v316, %v311
        %v319 = vadd.s32 %v300, 4294967272
        %v320 = vlaneseq
        %v321 = vshrl.u32 %v320, 7
        %v322 = vsub.s32 %v319, %v321
        %v323 = vrot.slane %v282, %v322
        %vm324 = vcmask 261312
        %v325 = vsel %vm324, %v323, %v318
        %v331 = vlaneseq
        %v332 = vshrl.u32 %v331, 7
        %v333 = vsub.s32 %v300, %v332
        %v334 = vrot.slane %v285, %v333
        %v335 = vlaneseq
        %v336 = vshrl.u32 %v335, 7
        %v337 = vsub.s32 %v305, %v336
        %v338 = vrot.slane %v288, %v337
        %v339 = vsel %vm310, %v338, %v334
        %v340 = vlaneseq
        %v341 = vshrl.u32 %v340, 7
        %v342 = vsub.s32 %v312, %v341
        %v343 = vrot.slane %v291, %v342
        %v344 = vsel %vm317, %v343, %v339
        %v345 = vlaneseq
        %v346 = vshrl.u32 %v345, 7
        %v347 = vsub.s32 %v319, %v346
        %v348 = vrot.slane %v294, %v347
        %v349 = vsel %vm324, %v348, %v344
        %vm351 = vcmask 1040384
        %v352 = vsel %vm351, %v325, %v349
        %v353 = vld [vmem:[%s1] sm:$0xff]
        %v354 = vld [vmem:[%s1 + $0x8] sm:$0xff]
        %v355 = vld [vmem:[%s1 + $0x10] sm:$0xff]
        %v356 = vld [vmem:[%s1 + $0x18] sm:$0xff]
        %v357 = vld [vmem:[%s2] sm:$0x3]
        %vm358 = vcmask 261120
        %v360 = vsel %vm358, %v352, 0
        %362 = vmatprep.subr.mxu0 0.0
        %363 = vmatpush1.msra.mxu0 0.0
        %364 = vmatprep.subr.mxu0 0.0
        %365 = vmatpush1.msra.mxu0 0.0
        %366 = vmatprep.subr.mxu0 0.0
        %367 = vmatpush1.msra.mxu0 0.0
        %368 = vmatprep.subr.mxu0 0.0
        %369 = vmatpush1.msra.mxu0 0.0
        %370 = vmatprep.subr.mxu0 0.0
        %371 = vmatpush1.msra.mxu0 0.0
        %372 = vmatprep.subr.mxu0 0.0
        %373 = vmatpush1.msra.mxu0 0.0
        %374 = vmatprep.subr.mxu0 0.0
        %375 = vmatpush1.msra.mxu0 0.0
        %376 = vmatprep.subr.mxu0 0.0
        %377 = vmatpush1.msra.mxu0 0.0
        %378 = vmatprep.subr.mxu0 0.0
        %379 = vmatpush1.msra.mxu0 0.0
        %380 = vmatprep.subr.mxu0 0.0
        %381 = vmatpush1.msra.mxu0 0.0
        %382 = vmatprep.subr.mxu0 0.0
        %383 = vmatpush1.msra.mxu0 0.0
        %384 = vmatprep.subr.mxu0 0.0
        %385 = vmatpush1.msra.mxu0 0.0
        %386 = vmatprep.subr.mxu0 0.0
        %387 = vmatpush1.msra.mxu0 %v356
        %388 = vmatprep.subr.mxu0 0.0
        %389 = vmatpush1.msra.mxu0 %v355
        %390 = vmatprep.subr.mxu0 0.0
        %391 = vmatpush1.msra.mxu0 %v354
        %392 = vmatprep.subr.mxu0 0.0
        %393 = vmatpush1.msra.mxu0 %v353
        %394 = vmatprep.subr.mxu0 0.0
        %395 = vmatpush2.msra.mxu0 0.0
        %396 = vmatprep.subr.mxu0 0.0
        %397 = vmatpush2.msra.mxu0 0.0
        %398 = vmatprep.subr.mxu0 0.0
        %399 = vmatpush2.msra.mxu0 0.0
        %400 = vmatprep.subr.mxu0 0.0
        %401 = vmatpush2.msra.mxu0 0.0
        %402 = vmatprep.subr.mxu0 0.0
        %403 = vmatpush2.msra.mxu0 0.0
        %404 = vmatprep.subr.mxu0 0.0
        %405 = vmatpush2.msra.mxu0 0.0
        %406 = vmatprep.subr.mxu0 0.0
        %407 = vmatpush2.msra.mxu0 0.0
        %408 = vmatprep.subr.mxu0 0.0
        %409 = vmatpush2.msra.mxu0 0.0
        %410 = vmatprep.subr.mxu0 0.0
        %411 = vmatpush2.msra.mxu0 0.0
        %412 = vmatprep.subr.mxu0 0.0
        %413 = vmatpush2.msra.mxu0 0.0
        %414 = vmatprep.subr.mxu0 0.0
        %415 = vmatpush2.msra.mxu0 0.0
        %416 = vmatprep.subr.mxu0 0.0
        %417 = vmatpush2.msra.mxu0 0.0
        %418 = vmatprep.subr.mxu0 0.0
        %419 = vmatpush2.msra.mxu0 0.0
        %420 = vmatprep.subr.mxu0 0.0
        %421 = vmatpush2.msra.mxu0 0.0
        %422 = vmatprep.subr.mxu0 0.0
        %423 = vmatpush2.msra.mxu0 0.0
        %424 = vmatprep.subr.mxu0 0.0
        %425 = vmatpush2.msra.mxu0 0.0
        %426 = vmatprep.mubr.f32.mxu0 0.0
        %427 = vmatmul.mubr.f32.gmra.mxu0 %v360
        %v428 = vpop.f32.mrf.mxu0
        %v429 = vadd.f32 0.0, %v428
        %v430 = vpop.f32.mrf.mxu0
        %431 = vdwg.mxu0
        %v432 = vmax.f32 %v429, 0.0
        %vm433 = vcmask 15360
        %v435 = vsel %vm433, %v432, 0
        %vm437 = vcmask 1041408
        %v439 = vsel %vm437, %v357, 0
        %441 = vmatprep.subr.mxu0 0.0
        %442 = vmatpush1.msra.mxu0 0.0
        %443 = vmatprep.subr.mxu0 0.0
        %444 = vmatpush1.msra.mxu0 0.0
        %445 = vmatprep.subr.mxu0 0.0
        %446 = vmatpush1.msra.mxu0 0.0
        %447 = vmatprep.subr.mxu0 0.0
        %448 = vmatpush1.msra.mxu0 0.0
        %449 = vmatprep.subr.mxu0 0.0
        %450 = vmatpush1.msra.mxu0 0.0
        %451 = vmatprep.subr.mxu0 0.0
        %452 = vmatpush1.msra.mxu0 0.0
        %453 = vmatprep.subr.mxu0 0.0
        %454 = vmatpush1.msra.mxu0 0.0
        %455 = vmatprep.subr.mxu0 0.0
        %456 = vmatpush1.msra.mxu0 0.0
        %457 = vmatprep.subr.mxu0 0.0
        %458 = vmatpush1.msra.mxu0 0.0
        %459 = vmatprep.subr.mxu0 0.0
        %460 = vmatpush1.msra.mxu0 0.0
        %461 = vmatprep.subr.mxu0 0.0
        %462 = vmatpush1.msra.mxu0 0.0
        %463 = vmatprep.subr.mxu0 0.0
        %464 = vmatpush1.msra.mxu0 0.0
        %465 = vmatprep.subr.mxu0 0.0
        %466 = vmatpush1.msra.mxu0 0.0
        %467 = vmatprep.subr.mxu0 0.0
        %468 = vmatpush1.msra.mxu0 0.0
        %469 = vmatprep.subr.mxu0 0.0
        %470 = vmatpush1.msra.mxu0 0.0
        %471 = vmatprep.subr.mxu0 0.0
        %472 = vmatpush1.msra.mxu0 %v439
        %473 = vmatprep.subr.mxu0 0.0
        %474 = vmatpush2.msra.mxu0 0.0
        %475 = vmatprep.subr.mxu0 0.0
        %476 = vmatpush2.msra.mxu0 0.0
        %477 = vmatprep.subr.mxu0 0.0
        %478 = vmatpush2.msra.mxu0 0.0
        %479 = vmatprep.subr.mxu0 0.0
        %480 = vmatpush2.msra.mxu0 0.0
        %481 = vmatprep.subr.mxu0 0.0
        %482 = vmatpush2.msra.mxu0 0.0
        %483 = vmatprep.subr.mxu0 0.0
        %484 = vmatpush2.msra.mxu0 0.0
        %485 = vmatprep.subr.mxu0 0.0
        %486 = vmatpush2.msra.mxu0 0.0
        %487 = vmatprep.subr.mxu0 0.0
        %488 = vmatpush2.msra.mxu0 0.0
        %489 = vmatprep.subr.mxu0 0.0
        %490 = vmatpush2.msra.mxu0 0.0
        %491 = vmatprep.subr.mxu0 0.0
        %492 = vmatpush2.msra.mxu0 0.0
        %493 = vmatprep.subr.mxu0 0.0
        %494 = vmatpush2.msra.mxu0 0.0
        %495 = vmatprep.subr.mxu0 0.0
        %496 = vmatpush2.msra.mxu0 0.0
        %497 = vmatprep.subr.mxu0 0.0
        %498 = vmatpush2.msra.mxu0 0.0
        %499 = vmatprep.subr.mxu0 0.0
        %500 = vmatpush2.msra.mxu0 0.0
        %501 = vmatprep.subr.mxu0 0.0
        %502 = vmatpush2.msra.mxu0 0.0
        %503 = vmatprep.subr.mxu0 0.0
        %504 = vmatpush2.msra.mxu0 0.0
        %505 = vmatprep.mubr.f32.mxu0 0.0
        %506 = vmatmul.mubr.f32.gmra.mxu0 %v435
        %v507 = vpop.f32.mrf.mxu0
        %v508 = vadd.f32 0.0, %v507
        %v509 = vpop.f32.mrf.mxu0
        %510 = vdwg.mxu0
        %v511 = vxor.u32 %v508, 2147483648
        %v512 = vmul.f32 %v511, 1.442695
        %v513 = vpow.pop %v512
        %v514 = vadd.f32 %v513, 1.0
        %v515 = vrcp.pop %v514
        %v516 = vmul.f32 1.0, %v515
        %v518 = vrot.slane %v516, 1
        %v520 = vadd.f32 %v516, %v518
        %v521 = vlaneseq
        %v522 = vshrl.u32 %v521, 7
        %v523 = vsub.s32 0, %v522
        %v524 = vrot.slane %v520, %v523
        %526 = vbcast.lane.b32.xlu0 %v524, 256
        %v527 = vpop.permute.xlu0 %526
        %s529 = sor.u32 256, 8
        %530 = vbcast.lane.b32.xlu0 %v524, %s529
        %v531 = vpop.permute.xlu0 %530
        %s533 = sor.u32 256, 16
        %534 = vbcast.lane.b32.xlu0 %v524, %s533
        %v535 = vpop.permute.xlu0 %534
        %s537 = sor.u32 256, 24
        %538 = vbcast.lane.b32.xlu0 %v524, %s537
        %v539 = vpop.permute.xlu0 %538
        %v540 = vmul.f32 %v259, %v527
        %v541 = vmul.f32 %v260, %v527
        %v542 = vmul.f32 %v261, %v531
        %v543 = vmul.f32 %v262, %v531
        %v544 = vmul.f32 %v263, %v535
        %v545 = vmul.f32 %v264, %v535
        %v546 = vmul.f32 %v265, %v539
        %v547 = vmul.f32 %v266, %v539
        %v548 = vadd.f32 %v540, %v542
        %v549 = vadd.f32 %v548, %v544
        %v550 = vadd.f32 %v549, %v546
        %v551 = vrot.slane %v550, 4
        %v552 = vadd.f32 %v550, %v551
        %v553 = vrot.slane %v552, 2
        %v554 = vadd.f32 %v552, %v553
        %v555 = vrot.slane %v554, 1
        %v556 = vadd.f32 %v554, %v555
        %v557 = vadd.f32 %v541, %v543
        %v558 = vadd.f32 %v557, %v545
        %v559 = vadd.f32 %v558, %v547
        %v560 = vrot.slane %v559, 4
        %v561 = vadd.f32 %v559, %v560
        %v562 = vrot.slane %v561, 2
        %v563 = vadd.f32 %v561, %v562
        %v564 = vrot.slane %v563, 1
        %v565 = vadd.f32 %v563, %v564
        %v566 = vmul.f32 %v556, 0.03125
        %v567 = vmul.f32 %v565, 0.03125
        %v568 = vmax.f32 %v540, %v544
        %v569 = vmax.f32 %v542, %v546
        %v570 = vmax.f32 %v568, %v569
        %v571 = vrot.slane %v570, 4
        %v572 = vmax.f32 %v570, %v571
        %v573 = vrot.slane %v572, 2
        %v574 = vmax.f32 %v572, %v573
        %v575 = vrot.slane %v574, 1
        %v576 = vmax.f32 %v574, %v575
        %v577 = vmax.f32 %v541, %v545
        %v578 = vmax.f32 %v543, %v547
        %v579 = vmax.f32 %v577, %v578
        %v580 = vrot.slane %v579, 4
        %v581 = vmax.f32 %v579, %v580
        %v582 = vrot.slane %v581, 2
        %v583 = vmax.f32 %v581, %v582
        %v584 = vrot.slane %v583, 1
        %v585 = vmax.f32 %v583, %v584
        %v586 = vld [vmem:[#allocation6] sm:$0xff]
        %v587 = vld [vmem:[#allocation6 + $0x8] sm:$0xff]
        %v588 = vld [vmem:[#allocation6 + $0x10] sm:$0xff]
        %v589 = vld [vmem:[#allocation6 + $0x18] sm:$0xff]
        %v590 = vld [vmem:[#allocation6 + $0x20] sm:$0xff]
        %v591 = vld [vmem:[#allocation6 + $0x28] sm:$0xff]
        %v592 = vld [vmem:[#allocation6 + $0x30] sm:$0xff]
        %v593 = vld [vmem:[#allocation6 + $0x38] sm:$0xff]
        %v594 = vld [vmem:[#allocation6 + $0x40] sm:$0xff]
        %v595 = vld [vmem:[#allocation6 + $0x48] sm:$0xff]
        %v596 = vld [vmem:[#allocation6 + $0x50] sm:$0xff]
        %v597 = vld [vmem:[#allocation6 + $0x58] sm:$0xff]
        %v598 = vld [vmem:[#allocation6 + $0x60] sm:$0xff]
        %v599 = vld [vmem:[#allocation6 + $0x68] sm:$0xff]
        %v600 = vld [vmem:[#allocation6 + $0x70] sm:$0xff]
        %v601 = vld [vmem:[#allocation6 + $0x78] sm:$0xff]
        %v602 = vld [vmem:[#allocation6 + $0x80] sm:$0xff]
        %v603 = vld [vmem:[#allocation6 + $0x88] sm:$0xff]
        %v604 = vld [vmem:[#allocation6 + $0x90] sm:$0xff]
        %v605 = vld [vmem:[#allocation6 + $0x98] sm:$0xff]
        %v606 = vld [vmem:[#allocation6 + $0xa0] sm:$0xff]
        %v607 = vld [vmem:[#allocation6 + $0xa8] sm:$0xff]
        %v608 = vld [vmem:[#allocation6 + $0xb0] sm:$0xff]
        %v609 = vld [vmem:[#allocation6 + $0xb8] sm:$0xff]
        %v610 = vld [vmem:[#allocation6 + $0xc0] sm:$0xff]
        %v611 = vld [vmem:[#allocation6 + $0xc8] sm:$0xff]
        %v612 = vld [vmem:[#allocation6 + $0xd0] sm:$0xff]
        %v613 = vld [vmem:[#allocation6 + $0xd8] sm:$0xff]
        %v614 = vld [vmem:[#allocation6 + $0xe0] sm:$0xff]
        %v615 = vld [vmem:[#allocation6 + $0xe8] sm:$0xff]
        %v616 = vld [vmem:[#allocation6 + $0xf0] sm:$0xff]
        %v617 = vld [vmem:[#allocation6 + $0xf8] sm:$0xff]
        %v618 = vld [vmem:[#allocation6 + $0x100] sm:$0xff]
        %v619 = vld [vmem:[#allocation6 + $0x108] sm:$0xff]
        %v620 = vld [vmem:[#allocation6 + $0x110] sm:$0xff]
        %v621 = vld [vmem:[#allocation6 + $0x118] sm:$0xff]
        %v622 = vld [vmem:[#allocation6 + $0x120] sm:$0xff]
        %v623 = vld [vmem:[#allocation6 + $0x128] sm:$0xff]
        %v624 = vld [vmem:[#allocation6 + $0x130] sm:$0xff]
        %v625 = vld [vmem:[#allocation6 + $0x138] sm:$0xff]
        %v626 = vld [vmem:[#allocation6 + $0x140] sm:$0xff]
        %v627 = vld [vmem:[#allocation6 + $0x148] sm:$0xff]
        %v628 = vld [vmem:[#allocation6 + $0x150] sm:$0xff]
        %v629 = vld [vmem:[#allocation6 + $0x158] sm:$0xff]
        %v630 = vld [vmem:[#allocation6 + $0x160] sm:$0xff]
        %v631 = vld [vmem:[#allocation6 + $0x168] sm:$0xff]
        %v632 = vld [vmem:[#allocation6 + $0x170] sm:$0xff]
        %v633 = vld [vmem:[#allocation6 + $0x178] sm:$0xff]
        %v634 = vld [vmem:[#allocation6 + $0x180] sm:$0xff]
        %v635 = vld [vmem:[#allocation6 + $0x188] sm:$0xff]
        %v636 = vld [vmem:[#allocation6 + $0x190] sm:$0xff]
        %v637 = vld [vmem:[#allocation6 + $0x198] sm:$0xff]
        %v638 = vld [vmem:[#allocation6 + $0x1a0] sm:$0xff]
        %v639 = vld [vmem:[#allocation6 + $0x1a8] sm:$0xff]
        %v640 = vld [vmem:[#allocation6 + $0x1b0] sm:$0xff]
        %v641 = vld [vmem:[#allocation6 + $0x1b8] sm:$0xff]
        %v642 = vld [vmem:[#allocation6 + $0x1c0] sm:$0xff]
        %v643 = vld [vmem:[#allocation6 + $0x1c8] sm:$0xff]
        %v644 = vld [vmem:[#allocation6 + $0x1d0] sm:$0xff]
        %v645 = vld [vmem:[#allocation6 + $0x1d8] sm:$0xff]
        %v646 = vld [vmem:[#allocation6 + $0x1e0] sm:$0xff]
        %v647 = vld [vmem:[#allocation6 + $0x1e8] sm:$0xff]
        %v648 = vld [vmem:[#allocation6 + $0x1f0] sm:$0xff]
        %v649 = vld [vmem:[#allocation6 + $0x1f8] sm:$0xff]
        %v650 = vld [vmem:[#allocation6 + $0x200] sm:$0xff]
        %v651 = vld [vmem:[#allocation6 + $0x208] sm:$0xff]
        %v652 = vld [vmem:[#allocation6 + $0x210] sm:$0xff]
        %v653 = vld [vmem:[#allocation6 + $0x218] sm:$0xff]
        %v654 = vld [vmem:[#allocation6 + $0x220] sm:$0xff]
        %v655 = vld [vmem:[#allocation6 + $0x228] sm:$0xff]
        %v656 = vld [vmem:[#allocation6 + $0x230] sm:$0xff]
        %v657 = vld [vmem:[#allocation6 + $0x238] sm:$0xff]
        %v658 = vld [vmem:[#allocation6 + $0x240] sm:$0xff]
        %v659 = vld [vmem:[#allocation6 + $0x248] sm:$0xff]
        %v660 = vld [vmem:[#allocation6 + $0x250] sm:$0xff]
        %v661 = vld [vmem:[#allocation6 + $0x258] sm:$0xff]
        %v662 = vld [vmem:[#allocation6 + $0x260] sm:$0xff]
        %v663 = vld [vmem:[#allocation6 + $0x268] sm:$0xff]
        %v664 = vld [vmem:[#allocation6 + $0x270] sm:$0xff]
        %v665 = vld [vmem:[#allocation6 + $0x278] sm:$0xff]
        %v666 = vld [vmem:[#allocation6 + $0x280] sm:$0xff]
        %v667 = vld [vmem:[#allocation6 + $0x288] sm:$0xff]
        %v668 = vld [vmem:[#allocation6 + $0x290] sm:$0xff]
        %v669 = vld [vmem:[#allocation6 + $0x298] sm:$0xff]
        %v670 = vld [vmem:[#allocation6 + $0x2a0] sm:$0xff]
        %v671 = vld [vmem:[#allocation6 + $0x2a8] sm:$0xff]
        %v672 = vld [vmem:[#allocation6 + $0x2b0] sm:$0xff]
        %v673 = vld [vmem:[#allocation6 + $0x2b8] sm:$0xff]
        %v674 = vld [vmem:[#allocation6 + $0x2c0] sm:$0xff]
        %v675 = vld [vmem:[#allocation6 + $0x2c8] sm:$0xff]
        %v676 = vld [vmem:[#allocation6 + $0x2d0] sm:$0xff]
        %v677 = vld [vmem:[#allocation6 + $0x2d8] sm:$0xff]
        %v678 = vld [vmem:[#allocation6 + $0x2e0] sm:$0xff]
        %v679 = vld [vmem:[#allocation6 + $0x2e8] sm:$0xff]
        %v680 = vld [vmem:[#allocation6 + $0x2f0] sm:$0xff]
        %v681 = vld [vmem:[#allocation6 + $0x2f8] sm:$0xff]
        %v682 = vld [vmem:[#allocation6 + $0x300] sm:$0xff]
        %v683 = vld [vmem:[#allocation6 + $0x308] sm:$0xff]
        %v684 = vld [vmem:[#allocation6 + $0x310] sm:$0xff]
        %v685 = vld [vmem:[#allocation6 + $0x318] sm:$0xff]
        %v686 = vld [vmem:[#allocation6 + $0x320] sm:$0xff]
        %v687 = vld [vmem:[#allocation6 + $0x328] sm:$0xff]
        %v688 = vld [vmem:[#allocation6 + $0x330] sm:$0xff]
        %v689 = vld [vmem:[#allocation6 + $0x338] sm:$0xff]
        %v690 = vld [vmem:[#allocation6 + $0x340] sm:$0xff]
        %v691 = vld [vmem:[#allocation6 + $0x348] sm:$0xff]
        %v692 = vld [vmem:[#allocation6 + $0x350] sm:$0xff]
        %v693 = vld [vmem:[#allocation6 + $0x358] sm:$0xff]
        %v694 = vld [vmem:[#allocation6 + $0x360] sm:$0xff]
        %v695 = vld [vmem:[#allocation6 + $0x368] sm:$0xff]
        %v696 = vld [vmem:[#allocation6 + $0x370] sm:$0xff]
        %v697 = vld [vmem:[#allocation6 + $0x378] sm:$0xff]
        %v698 = vld [vmem:[#allocation6 + $0x380] sm:$0xff]
        %v699 = vld [vmem:[#allocation6 + $0x388] sm:$0xff]
        %v700 = vld [vmem:[#allocation6 + $0x390] sm:$0xff]
        %v701 = vld [vmem:[#allocation6 + $0x398] sm:$0xff]
        %v702 = vld [vmem:[#allocation6 + $0x3a0] sm:$0xff]
        %v703 = vld [vmem:[#allocation6 + $0x3a8] sm:$0xff]
        %v704 = vld [vmem:[#allocation6 + $0x3b0] sm:$0xff]
        %v705 = vld [vmem:[#allocation6 + $0x3b8] sm:$0xff]
        %v706 = vld [vmem:[#allocation6 + $0x3c0] sm:$0xff]
        %v707 = vld [vmem:[#allocation6 + $0x3c8] sm:$0xff]
        %v708 = vld [vmem:[#allocation6 + $0x3d0] sm:$0xff]
        %v709 = vld [vmem:[#allocation6 + $0x3d8] sm:$0xff]
        %v710 = vld [vmem:[#allocation6 + $0x3e0] sm:$0xff]
        %v711 = vld [vmem:[#allocation6 + $0x3e8] sm:$0xff]
        %v712 = vld [vmem:[#allocation6 + $0x3f0] sm:$0xff]
        %v713 = vld [vmem:[#allocation6 + $0x3f8] sm:$0xff]
        %s714 = sld [smem:[#allocation2]]
        %v715 = vstv %s714
        %716 = vmatprep.subr.mxu0 %v617
        %717 = vmatpush1.msra.mxu0 %v616
        %718 = vmatprep.subr.mxu0 %v615
        %719 = vmatpush1.msra.mxu0 %v614
        %720 = vmatprep.subr.mxu0 %v613
        %721 = vmatpush1.msra.mxu0 %v612
        %722 = vmatprep.subr.mxu0 %v611
        %723 = vmatpush1.msra.mxu0 %v610
        %724 = vmatprep.subr.mxu0 %v609
        %725 = vmatpush1.msra.mxu0 %v608
        %726 = vmatprep.subr.mxu0 %v607
        %727 = vmatpush1.msra.mxu0 %v606
        %728 = vmatprep.subr.mxu0 %v605
        %729 = vmatpush1.msra.mxu0 %v604
        %730 = vmatprep.subr.mxu0 %v603
        %731 = vmatpush1.msra.mxu0 %v602
        %732 = vmatprep.subr.mxu0 %v601
        %733 = vmatpush1.msra.mxu0 %v600
        %734 = vmatprep.subr.mxu0 %v599
        %735 = vmatpush1.msra.mxu0 %v598
        %736 = vmatprep.subr.mxu0 %v597
        %737 = vmatpush1.msra.mxu0 %v596
        %738 = vmatprep.subr.mxu0 %v595
        %739 = vmatpush1.msra.mxu0 %v594
        %740 = vmatprep.subr.mxu0 %v593
        %741 = vmatpush1.msra.mxu0 %v592
        %742 = vmatprep.subr.mxu0 %v591
        %743 = vmatpush1.msra.mxu0 %v590
        %744 = vmatprep.subr.mxu0 %v589
        %745 = vmatpush1.msra.mxu0 %v588
        %746 = vmatprep.subr.mxu0 %v587
        %747 = vmatpush1.msra.mxu0 %v586
        %748 = vmatprep.subr.mxu0 %v649
        %749 = vmatpush2.msra.mxu0 %v648
        %750 = vmatprep.subr.mxu0 %v647
        %751 = vmatpush2.msra.mxu0 %v646
        %752 = vmatprep.subr.mxu0 %v645
        %753 = vmatpush2.msra.mxu0 %v644
        %754 = vmatprep.subr.mxu0 %v643
        %755 = vmatpush2.msra.mxu0 %v642
        %756 = vmatprep.subr.mxu0 %v641
        %757 = vmatpush2.msra.mxu0 %v640
        %758 = vmatprep.subr.mxu0 %v639
        %759 = vmatpush2.msra.mxu0 %v638
        %760 = vmatprep.subr.mxu0 %v637
        %761 = vmatpush2.msra.mxu0 %v636
        %762 = vmatprep.subr.mxu0 %v635
        %763 = vmatpush2.msra.mxu0 %v634
        %764 = vmatprep.subr.mxu0 %v633
        %765 = vmatpush2.msra.mxu0 %v632
        %766 = vmatprep.subr.mxu0 %v631
        %767 = vmatpush2.msra.mxu0 %v630
        %768 = vmatprep.subr.mxu0 %v629
        %769 = vmatpush2.msra.mxu0 %v628
        %770 = vmatprep.subr.mxu0 %v627
        %771 = vmatpush2.msra.mxu0 %v626
        %772 = vmatprep.subr.mxu0 %v625
        %773 = vmatpush2.msra.mxu0 %v624
        %774 = vmatprep.subr.mxu0 %v623
        %775 = vmatpush2.msra.mxu0 %v622
        %776 = vmatprep.subr.mxu0 %v621
        %777 = vmatpush2.msra.mxu0 %v620
        %778 = vmatprep.subr.mxu0 %v619
        %779 = vmatpush2.msra.mxu0 %v618
        %780 = vmatprep.mubr.f32.mxu0 %v567
        %781 = vmatmul.mubr.f32.gmra.mxu0 %v566
        %v782 = vpop.f32.mrf.mxu0
        %v783 = vadd.f32 %v715, %v782
        %v784 = vpop.f32.mrf.mxu0
        %v785 = vadd.f32 %v715, %v784
        %786 = vdwg.mxu0
        %787 = vmatprep.subr.mxu0 %v681
        %788 = vmatpush1.msra.mxu0 %v680
        %789 = vmatprep.subr.mxu0 %v679
        %790 = vmatpush1.msra.mxu0 %v678
        %791 = vmatprep.subr.mxu0 %v677
        %792 = vmatpush1.msra.mxu0 %v676
        %793 = vmatprep.subr.mxu0 %v675
        %794 = vmatpush1.msra.mxu0 %v674
        %795 = vmatprep.subr.mxu0 %v673
        %796 = vmatpush1.msra.mxu0 %v672
        %797 = vmatprep.subr.mxu0 %v671
        %798 = vmatpush1.msra.mxu0 %v670
        %799 = vmatprep.subr.mxu0 %v669
        %800 = vmatpush1.msra.mxu0 %v668
        %801 = vmatprep.subr.mxu0 %v667
        %802 = vmatpush1.msra.mxu0 %v666
        %803 = vmatprep.subr.mxu0 %v665
        %804 = vmatpush1.msra.mxu0 %v664
        %805 = vmatprep.subr.mxu0 %v663
        %806 = vmatpush1.msra.mxu0 %v662
        %807 = vmatprep.subr.mxu0 %v661
        %808 = vmatpush1.msra.mxu0 %v660
        %809 = vmatprep.subr.mxu0 %v659
        %810 = vmatpush1.msra.mxu0 %v658
        %811 = vmatprep.subr.mxu0 %v657
        %812 = vmatpush1.msra.mxu0 %v656
        %813 = vmatprep.subr.mxu0 %v655
        %814 = vmatpush1.msra.mxu0 %v654
        %815 = vmatprep.subr.mxu0 %v653
        %816 = vmatpush1.msra.mxu0 %v652
        %817 = vmatprep.subr.mxu0 %v651
        %818 = vmatpush1.msra.mxu0 %v650
        %819 = vmatprep.subr.mxu0 %v713
        %820 = vmatpush2.msra.mxu0 %v712
        %821 = vmatprep.subr.mxu0 %v711
        %822 = vmatpush2.msra.mxu0 %v710
        %823 = vmatprep.subr.mxu0 %v709
        %824 = vmatpush2.msra.mxu0 %v708
        %825 = vmatprep.subr.mxu0 %v707
        %826 = vmatpush2.msra.mxu0 %v706
        %827 = vmatprep.subr.mxu0 %v705
        %828 = vmatpush2.msra.mxu0 %v704
        %829 = vmatprep.subr.mxu0 %v703
        %830 = vmatpush2.msra.mxu0 %v702
        %831 = vmatprep.subr.mxu0 %v701
        %832 = vmatpush2.msra.mxu0 %v700
        %833 = vmatprep.subr.mxu0 %v699
        %834 = vmatpush2.msra.mxu0 %v698
        %835 = vmatprep.subr.mxu0 %v697
        %836 = vmatpush2.msra.mxu0 %v696
        %837 = vmatprep.subr.mxu0 %v695
        %838 = vmatpush2.msra.mxu0 %v694
        %839 = vmatprep.subr.mxu0 %v693
        %840 = vmatpush2.msra.mxu0 %v692
        %841 = vmatprep.subr.mxu0 %v691
        %842 = vmatpush2.msra.mxu0 %v690
        %843 = vmatprep.subr.mxu0 %v689
        %844 = vmatpush2.msra.mxu0 %v688
        %845 = vmatprep.subr.mxu0 %v687
        %846 = vmatpush2.msra.mxu0 %v686
        %847 = vmatprep.subr.mxu0 %v685
        %848 = vmatpush2.msra.mxu0 %v684
        %849 = vmatprep.subr.mxu0 %v683
        %850 = vmatpush2.msra.mxu0 %v682
        %851 = vmatprep.mubr.f32.mxu0 %v585
        %852 = vmatmul.mubr.f32.gmra.mxu0 %v576
        %v853 = vpop.f32.mrf.mxu0
        %v854 = vadd.f32 %v783, %v853
        %v855 = vpop.f32.mrf.mxu0
        %v856 = vadd.f32 %v785, %v855
        %857 = vdwg.mxu0
        %v858 = vxor.u32 %v854, 2147483648
        %v859 = vxor.u32 %v856, 2147483648
        %v860 = vmul.f32 %v858, 1.442695
        %v861 = vpow.pop %v860
        %v862 = vmul.f32 %v859, 1.442695
        %v863 = vpow.pop %v862
        %v864 = vadd.f32 %v861, 1.0
        %v865 = vadd.f32 %v863, 1.0
        %v866 = vrcp.pop %v864
        %v867 = vmul.f32 1.0, %v866
        %v868 = vrcp.pop %v865
        %v869 = vmul.f32 1.0, %v868
        %v870 = vlaneseq
        %v871 = vshrl.u32 %v870, 7
        %v872 = vsub.s32 0, %v871
        %v873 = vrot.slane %v867, %v872
        %v874 = vlaneseq
        %v875 = vshrl.u32 %v874, 7
        %v876 = vsub.s32 0, %v875
        %v877 = vrot.slane %v869, %v876
        %v878 = vmul.f32 %v540, %v873
        %v879 = vmul.f32 %v541, %v877
        %v880 = vmul.f32 %v542, %v873
        %v881 = vmul.f32 %v543, %v877
        %v882 = vmul.f32 %v544, %v873
        %v883 = vmul.f32 %v545, %v877
        %v884 = vmul.f32 %v546, %v873
        %v885 = vmul.f32 %v547, %v877
        %886 = vst [vmem:[%s258] sm:$0xff] %v878
        %887 = vst [vmem:[%s258 + $0x8] sm:$0xff] %v879
        %888 = vst [vmem:[%s258 + $0x10] sm:$0xff] %v880
        %889 = vst [vmem:[%s258 + $0x18] sm:$0xff] %v881
        %890 = vst [vmem:[%s258 + $0x20] sm:$0xff] %v882
        %891 = vst [vmem:[%s258 + $0x28] sm:$0xff] %v883
        %892 = vst [vmem:[%s258 + $0x30] sm:$0xff] %v884
        %893 = vst [vmem:[%s258 + $0x38] sm:$0xff] %v885
        %s894 = sand.u32 %s142, 1
        %s895 = scalar_lea.sflag [#allocation5], %s894
        %s896 = sand.u32 %s142, 1
        %s897 = smul.addr %s896, 64
        %s898 = scalar_lea.vmem [#allocation8], %s897
        // Predicated region
        $region49: #{tpu_custom_call.1} parent=39 // pred_check
          %p899 = pneg %p152
        $region50: #{tpu_custom_call.1} parent=39 // pred_check_branch
          %901 = sbr.rel (%p899) target = $region52
        $region51: #{tpu_custom_call.1} parent=39 // pred_region
          %s903 = ssub.s32 1024, 1024
          %904 = vsyncadd %s895, %s903
          %s905 = smul.addr %s24, 8
          %s906 = smul.addr %s905, 128
          %s907 = scalar_lea.hbm %s5, %s906
          %s908 = sshll.u32 %s898, 4
          %s909 = int_to_ptr.vmem [resolvable:$true] %s908
          %914 = dma.vmem_to_hbm [thread:$0]  %s909, 1024, %s907, %s895, 256, 256, 16
        $region52: #{tpu_custom_call.1} parent=39 // pred_fallthru
          _
      $region40: #{tpu_custom_call.1} parent=5 // pred_fallthru
        _
      %p915 = scmp.le.s32.totalorder 2, %s19
      // Predicated region
      $region53: #{tpu_custom_call.1} parent=5 // pred_check
        %p916 = pneg %p915
      $region54: #{tpu_custom_call.1} parent=5 // pred_check_branch
        %918 = sbr.rel (%p916) target = $region56
      $region55: #{tpu_custom_call.1} parent=5 // pred_region
        %s919 = ssub.s32 %s19, 2
        // Predicated region
        $region57: #{tpu_custom_call.1} parent=55 // pred_check
          %p920 = pneg %p158
        $region58: #{tpu_custom_call.1} parent=55 // pred_check_branch
          %922 = sbr.rel (%p920) target = $region60
        $region59: #{tpu_custom_call.1} parent=55 // pred_region
          %s923 = sand.u32 %s143, 1
          %s924 = scalar_lea.sflag [#allocation5], %s923
          %s925 = sand.u32 %s143, 1
          %s926 = smul.addr %s925, 64
          %s927 = scalar_lea.vmem [#allocation8], %s926
          %928 = dma.done %s924, 1024
        $region60: #{tpu_custom_call.1} parent=55 // pred_fallthru
          _
      $region56: #{tpu_custom_call.1} parent=5 // pred_fallthru
        _
    $region6: #{tpu_custom_call.1} parent=1 // loop_footer
      %s23 = sadd.s32 1, %s19
    $region7: #{tpu_custom_call.1} parent=1 // loop_footer_branch
      %18 = sbr.rel target = $region3
    $region8: #{tpu_custom_call.1} parent=1 // loop_exit
      _
    %929 = vsyncpa [#allocation4], 1
    %s930 = scalar_lea.sflag [#allocation4], 1
    %931 = vsyncpa %s930, 1
    %932 = vsyncpa [#allocation7], 1
    %933 = vsyncpa [#allocation5], 1
    %s934 = scalar_lea.sflag [#allocation5], 1
    %935 = vsyncpa %s934, 1

</llo_original>
